<compile_context>
chip_gen: v7x
topology: tpu7x:2x2x1
jax: 0.10.0
libtpu: 0.0.40
codegen_flags: <defaults>
</compile_context>

<pallas_src>
import functools

import jax
import jax.numpy as jnp
from jax.experimental import pallas as pl
from jax.experimental.pallas import tpu as pltpu

dim_x = 4
dim_xc = 0
dim_xe = dim_x + dim_xc          # 4
HID = 20
OUT = dim_xe * dim_xe            # 16

PACK = 8                         # batch rows packed per lane-dense row
XP = PACK * dim_xe               # 32   packed input width
HP = PACK * HID                  # 160  packed hidden width
OP = PACK * OUT                  # 128  packed output width (fully lane-dense)

_ALIGN = 16                      # packed-row alignment: covers f32 (8,128) and bf16 (16,128) tiles


def _round_up(a, b):
    return -(-a // b) * b


def qnn_kernel(xp_ref, w1_ref, b1_ref, w2_ref, b2_ref, o_ref):
    """Two matmuls + tanh, fully in VMEM; compute/accumulation in f32.

    tanh runs on the EUP (separate issue slot) and has ~2-3x slack vs HBM at
    f32 I/O on all generations; re-check with a bundle dump if I/O goes bf16.
    """
    xp = xp_ref[...].astype(jnp.float32)                                 # (TP, 32)
    h = jnp.dot(xp, w1_ref[...], preferred_element_type=jnp.float32)
    h = jnp.tanh(h + b1_ref[...])                                        # (TP, 160)
    o = jnp.dot(h, w2_ref[...], preferred_element_type=jnp.float32)
    o_ref[...] = (o + b2_ref[...]).astype(o_ref.dtype)                   # (TP, 128)


def pack_params(w1, b1, w2, b2):
    """Build block-diagonal packed weights ONCE (hoisted out of the hot path).

    kron(I_PACK, W) makes the row-major packed batch layout equivalent to a
    plain matmul, so the kernel needs no in-kernel reshapes.  Accepts biases
    shaped (H,) or (1, H).
    """
    w1 = jnp.asarray(w1, jnp.float32).reshape(dim_xe, HID)
    b1 = jnp.asarray(b1, jnp.float32).reshape(1, HID)
    w2 = jnp.asarray(w2, jnp.float32).reshape(HID, OUT)
    b2 = jnp.asarray(b2, jnp.float32).reshape(1, OUT)
    eye = jnp.eye(PACK, dtype=jnp.float32)
    w1p = jnp.kron(eye, w1)                  # (32, 160)
    w2p = jnp.kron(eye, w2)                  # (160, 128)
    b1p = jnp.tile(b1, (1, PACK))            # (1, 160)
    b2p = jnp.tile(b2, (1, PACK))            # (1, 128)
    return w1p, b1p, w2p, b2p


def _choose_tiling(P, tile_packed):
    """Packed rows per grid step (TP) and number of grid steps for P rows."""
    cap = max(_ALIGN, (int(tile_packed) // _ALIGN) * _ALIGN)
    steps = max(1, pl.cdiv(P, cap))          # fewest steps with TP <= cap
    if steps == 1 and P > _ALIGN:
        steps = 2                            # expose work to both v7x TensorCores
    if steps > 1 and steps % 2:
        steps += 1                           # even split across v7x's 2 cores
    tp = max(_ALIGN, _round_up(pl.cdiv(P, steps), _ALIGN))
    grid = pl.cdiv(P, tp)                    # last block may be partial (ragged)
    return tp, grid


@functools.partial(jax.jit, static_argnames=("tile_packed", "io_dtype"))
def qnn_forward(x, packed_params, *, tile_packed=2048, io_dtype=jnp.float32):
    """x: (B, dim_xe) -> q: (B, dim_xe, dim_xe).

    packed_params: result of pack_params() (compute once, reuse every call).
    io_dtype: HBM-facing dtype of the x / q tiles (bf16 roughly halves traffic
      on the bandwidth-bound path for v6e/v7x); compute stays f32.
    """
    w1p, b1p, w2p, b2p = packed_params
    B = x.shape[0]
    x = x.astype(io_dtype)

    # Packed-row count.  Only a <=7-row tail is padded; P itself is NOT
    # rounded up -- Pallas handles the ragged last block with partial DMAs.
    P = pl.cdiv(B, PACK)
    B_pack = P * PACK
    if B_pack != B:
        x = jnp.pad(x, ((0, B_pack - B), (0, 0)))
    xp = x.reshape(P, XP)                    # free row-major view

    TP, grid = _choose_tiling(P, tile_packed)

    q_packed = pl.pallas_call(
        qnn_kernel,
        out_shape=jax.ShapeDtypeStruct((P, OP), io_dtype),
        grid=(grid,),
        in_specs=[
            pl.BlockSpec((TP, XP), lambda i: (i, 0)),   # packed x tile
            pl.BlockSpec((XP, HP), lambda i: (0, 0)),   # W1 block-diag (VMEM resident)
            pl.BlockSpec((1, HP), lambda i: (0, 0)),    # b1 tiled
            pl.BlockSpec((HP, OP), lambda i: (0, 0)),   # W2 block-diag (VMEM resident)
            pl.BlockSpec((1, OP), lambda i: (0, 0)),    # b2 tiled
        ],
        out_specs=pl.BlockSpec((TP, OP), lambda i: (i, 0)),
        compiler_params=pltpu.CompilerParams(
            dimension_semantics=("parallel",),
            vmem_limit_bytes=32 * 1024 * 1024,          # fits v7x's smaller VMEM too
        ),
    )(xp, w1p, b1p, w2p, b2p)

    q_flat = q_packed.reshape(B_pack, OUT)   # free row-major view
    if B_pack != B:
        q_flat = q_flat[:B]                  # only materialized on ragged B
    return q_flat.reshape(B, dim_xe, dim_xe)


def init_params(key):
    """nn.Linear-style U[-1/sqrt(fan_in), 1/sqrt(fan_in)] init (deterministic)."""
    k1, k2, k3, k4 = jax.random.split(key, 4)
    bound1 = 1.0 / jnp.sqrt(float(dim_xe))
    bound2 = 1.0 / jnp.sqrt(float(HID))
    w1 = jax.random.uniform(k1, (dim_xe, HID), jnp.float32, -bound1, bound1)
    b1 = jax.random.uniform(k2, (1, HID), jnp.float32, -bound1, bound1)
    w2 = jax.random.uniform(k3, (HID, OUT), jnp.float32, -bound2, bound2)
    b2 = jax.random.uniform(k4, (1, OUT), jnp.float32, -bound2, bound2)
    return w1, b1, w2, b2


def _ref(x, w1, b1, w2, b2):
    """True-f32 reference (matches the PyTorch f32 forward)."""
    hp = jax.lax.Precision.HIGHEST
    h = jnp.tanh(jnp.dot(x, w1, precision=hp) + b1.reshape(1, -1))
    q = jnp.dot(h, w2, precision=hp) + b2.reshape(1, -1)
    return q.reshape(-1, dim_xe, dim_xe)


if __name__ == "__main__":
    key = jax.random.PRNGKey(0)
    kx1, kx2, kp = jax.random.split(key, 3)
    w1, b1, w2, b2 = init_params(kp)

    # Pack the weights ONCE (perf: hoisted out of the per-call path).
    packed = jax.block_until_ready(pack_params(w1, b1, w2, b2))

    # Tolerance: kernel uses default MXU matmul precision (per v5e guidance),
    # which may round operands to bf16; the reference is true f32.
    TOL = dict(atol=5e-2, rtol=5e-2)

    # Tiny batch: single grid step, partial (ragged) block smaller than a tile.
    B1 = 8
    x1 = jax.random.normal(kx1, (B1, dim_xe), jnp.float32)
    q1 = jax.block_until_ready(qnn_forward(x1, packed))
    assert q1.shape == (B1, dim_xe, dim_xe)
    assert jnp.allclose(q1, _ref(x1, w1, b1, w2, b2), **TOL)

    # Ragged batch: <=7-row input pad, ragged last block, 2 "parallel" grid steps.
    B2 = 300
    x2 = jax.random.normal(kx2, (B2, dim_xe), jnp.float32)
    q2 = jax.block_until_ready(qnn_forward(x2, packed))
    assert q2.shape == (B2, dim_xe, dim_xe)
    assert jnp.allclose(q2, _ref(x2, w1, b1, w2, b2), **TOL)

    # Optional bf16 HBM I/O (v6e/v7x bandwidth optimization); compute stays f32.
    q2b = jax.block_until_ready(qnn_forward(x2, packed, io_dtype=jnp.bfloat16))
    assert q2b.shape == (B2, dim_xe, dim_xe)
    assert float(jnp.max(jnp.abs(q2b.astype(jnp.float32) - _ref(x2, w1, b1, w2, b2)))) < 1e-1

    print("KERNEL_OK")
</pallas_src>

<mosaic_0001>
module attributes {stable_mosaic.version = 11 : i64} {
  func.func @qnn_kernel(%arg0: i32, %arg1: memref<16x32xf32, #tpu.memory_space<vmem>>, %arg2: memref<32x160xf32, #tpu.memory_space<vmem>>, %arg3: memref<1x160xf32, #tpu.memory_space<vmem>>, %arg4: memref<160x128xf32, #tpu.memory_space<vmem>>, %arg5: memref<1x128xf32, #tpu.memory_space<vmem>>, %arg6: memref<16x128xf32, #tpu.memory_space<vmem>>) attributes {dimension_semantics = [#tpu.dimension_semantics<parallel>], iteration_bounds = array<i64: 1>, scalar_prefetch = 0 : i64, scratch_operands = 0 : i64, tpu.core_type = #tpu.core_type<tc>, window_params = [{transform_indices = @transform_0, window_bounds = array<i64: 16, 32>}, {pipeline_mode = #tpu.pipeline_mode<synchronous>, transform_indices = @transform_1, window_bounds = array<i64: 32, 160>}, {pipeline_mode = #tpu.pipeline_mode<synchronous>, transform_indices = @transform_2, window_bounds = array<i64: 1, 160>}, {pipeline_mode = #tpu.pipeline_mode<synchronous>, transform_indices = @transform_3, window_bounds = array<i64: 160, 128>}, {pipeline_mode = #tpu.pipeline_mode<synchronous>, transform_indices = @transform_4, window_bounds = array<i64: 1, 128>}, {transform_indices = @transform_5, window_bounds = array<i64: 16, 128>}]} {
    %c0 = arith.constant 0 : index
    %c0_0 = arith.constant 0 : index
    %0 = vector.load %arg1[%c0, %c0_0] : memref<16x32xf32, #tpu.memory_space<vmem>>, vector<16x32xf32>
    %c0_1 = arith.constant 0 : index
    %c0_2 = arith.constant 0 : index
    %1 = vector.load %arg2[%c0_1, %c0_2] : memref<32x160xf32, #tpu.memory_space<vmem>>, vector<32x160xf32>
    %cst = arith.constant dense<0.000000e+00> : vector<16x160xf32>
    %2 = tpu.matmul %0, %1, %cst {dimension_numbers = #tpu.dot_dimension_numbers<[1], [0], [0], [1], [0, 0, 1, 1], [], []>} : vector<16x32xf32>, vector<32x160xf32>, vector<16x160xf32> -> vector<16x160xf32>
    %c0_3 = arith.constant 0 : index
    %c0_4 = arith.constant 0 : index
    %3 = vector.load %arg3[%c0_3, %c0_4] : memref<1x160xf32, #tpu.memory_space<vmem>>, vector<1x160xf32>
    %4 = vector.broadcast %3 : vector<1x160xf32> to vector<16x160xf32>
    %5 = arith.addf %2, %4 : vector<16x160xf32>
    %6 = math.tanh %5 : vector<16x160xf32>
    %c0_5 = arith.constant 0 : index
    %c0_6 = arith.constant 0 : index
    %7 = vector.load %arg4[%c0_5, %c0_6] : memref<160x128xf32, #tpu.memory_space<vmem>>, vector<160x128xf32>
    %cst_7 = arith.constant dense<0.000000e+00> : vector<16x128xf32>
    %8 = tpu.matmul %6, %7, %cst_7 {dimension_numbers = #tpu.dot_dimension_numbers<[1], [0], [0], [1], [0, 0, 1, 1], [], []>} : vector<16x160xf32>, vector<160x128xf32>, vector<16x128xf32> -> vector<16x128xf32>
    %c0_8 = arith.constant 0 : index
    %c0_9 = arith.constant 0 : index
    %9 = vector.load %arg5[%c0_8, %c0_9] : memref<1x128xf32, #tpu.memory_space<vmem>>, vector<1x128xf32>
    %10 = vector.broadcast %9 : vector<1x128xf32> to vector<16x128xf32>
    %11 = arith.addf %8, %10 : vector<16x128xf32>
    %c0_10 = arith.constant 0 : index
    %c0_11 = arith.constant 0 : index
    %12 = vector.load %arg6[%c0_10, %c0_11] : memref<16x128xf32, #tpu.memory_space<vmem>>, vector<16x128xf32>
    tpu.vector_store %arg6[%c0_10, %c0_11], %11 {strides = array<i32>} : memref<16x128xf32, #tpu.memory_space<vmem>>, vector<16x128xf32>,
    return
  }
  func.func @transform_0(%arg0: i32) -> (i32, i32) {
    %c0_i32 = arith.constant 0 : i32
    %c0_i32_0 = arith.constant 0 : i32
    return %arg0, %c0_i32 : i32, i32
  }
  func.func @transform_1(%arg0: i32) -> (i32, i32) {
    %c0_i32 = arith.constant 0 : i32
    %c0_i32_0 = arith.constant 0 : i32
    %c0_i32_1 = arith.constant 0 : i32
    return %c0_i32, %c0_i32_0 : i32, i32
  }
  func.func @transform_2(%arg0: i32) -> (i32, i32) {
    %c0_i32 = arith.constant 0 : i32
    %c0_i32_0 = arith.constant 0 : i32
    %c0_i32_1 = arith.constant 0 : i32
    return %c0_i32, %c0_i32_0 : i32, i32
  }
  func.func @transform_3(%arg0: i32) -> (i32, i32) {
    %c0_i32 = arith.constant 0 : i32
    %c0_i32_0 = arith.constant 0 : i32
    %c0_i32_1 = arith.constant 0 : i32
    return %c0_i32, %c0_i32_0 : i32, i32
  }
  func.func @transform_4(%arg0: i32) -> (i32, i32) {
    %c0_i32 = arith.constant 0 : i32
    %c0_i32_0 = arith.constant 0 : i32
    %c0_i32_1 = arith.constant 0 : i32
    return %c0_i32, %c0_i32_0 : i32, i32
  }
  func.func @transform_5(%arg0: i32) -> (i32, i32) {
    %c0_i32 = arith.constant 0 : i32
    %c0_i32_0 = arith.constant 0 : i32
    return %arg0, %c0_i32 : i32, i32
  }
}

</mosaic_0001>

<llo_original>
// kernel: qnn_forward.1
$region0: #{qnn_forward.1}
  #allocation0 [shape = 'u32[]', space=smem, size = 0x4, offset = 0x4, fixed_abs, tag = 'smem constant byte address 0x4 - core index']
  #allocation1 [shape = 'u32[144,128]{1,0:T(1,128)}', space=vmem, size = 0x12000, scoped, tag = 'internal scratch']
  %s0 = inlined_call_operand.vmem [shape: f32[1,32], index: 0, kind: input, shape index: {}]
  %s1 = inlined_call_operand.hbm [shape: f32[32,160], index: 1, kind: input, shape index: {}]
  %s2 = inlined_call_operand.vmem [shape: f32[1,160], index: 2, kind: input, shape index: {}]
  %s3 = inlined_call_operand.hbm [shape: f32[160,128], index: 3, kind: input, shape index: {}]
  %s4 = inlined_call_operand.vmem [shape: f32[1,128], index: 4, kind: input, shape index: {}]
  %s5 = inlined_call_operand.vmem [shape: f32[1,128], index: 5, kind: output, shape index: {}]
  %s6 = sld [smem:[#allocation0]]
  $region68: #{qnn_forward.1} parent=0
    _
  %s8 = ssub.s32 1, %s6
  %s9 = scalar_select 0, %s8, %s6
  $region1: #{qnn_forward.1} parent=0
    #allocation2 [shape = 'u8[32768]{0}', space=vmem, size = 0x8000, scoped, tag = 'input window, operand 1, single buffered']
    #allocation3 [shape = 's32[1]{0}', space=sflag, size = 0x4, scoped, tag = 'scoped memory for qnn_forward.1']
    #allocation4 [shape = 'u8[81920]{0}', space=vmem, size = 0x14000, scoped, tag = 'input window, operand 3, single buffered']
    #allocation5 [shape = 's32[1]{0}', space=sflag, size = 0x4, scoped, tag = 'scoped memory for qnn_forward.1']
    #allocation6 [shape = 'u8[8192]{0}', space=vmem, size = 0x2000, scoped, tag = 'output window, operand 0, single buffered']
    %10 = vsyncpa [#allocation3], 0
    %11 = vsyncpa [#allocation5], 0
    // Predicated region
    $region2: #{qnn_forward.1} parent=1 // pred_check
      _
    $region3: #{qnn_forward.1} parent=1 // pred_check_branch
      %13 = sbr.rel (0) target = $region5
    $region4: #{qnn_forward.1} parent=1 // pred_region
      _
    $region5: #{qnn_forward.1} parent=1 // pred_fallthru
      _
    // Predicated region
    $region6: #{qnn_forward.1} parent=1 // pred_check
      _
    $region7: #{qnn_forward.1} parent=1 // pred_check_branch
      %15 = sbr.rel (0) target = $region9
    $region8: #{qnn_forward.1} parent=1 // pred_region
      %s17 = ssub.s32 1024, 1024
      %18 = vsyncadd [#allocation3], %s17
      %s19 = sshll.u32 [#allocation2], 4
      %s20 = int_to_ptr.vmem [resolvable:$true] %s19
      %25 = dma.hbm_to_vmem [thread:$0]  %s1, 1024, %s20, [#allocation3], 256, 256, 16
    $region9: #{qnn_forward.1} parent=1 // pred_fallthru
      _
    // Predicated region
    $region10: #{qnn_forward.1} parent=1 // pred_check
      _
    $region11: #{qnn_forward.1} parent=1 // pred_check_branch
      %27 = sbr.rel (0) target = $region13
    $region12: #{qnn_forward.1} parent=1 // pred_region
      _
    $region13: #{qnn_forward.1} parent=1 // pred_fallthru
      _
    // Predicated region
    $region14: #{qnn_forward.1} parent=1 // pred_check
      _
    $region15: #{qnn_forward.1} parent=1 // pred_check_branch
      %29 = sbr.rel (0) target = $region17
    $region16: #{qnn_forward.1} parent=1 // pred_region
      %s31 = ssub.s32 2560, 2560
      %32 = vsyncadd [#allocation5], %s31
      %s33 = sshll.u32 [#allocation4], 4
      %s34 = int_to_ptr.vmem [resolvable:$true] %s33
      %39 = dma.hbm_to_vmem [thread:$0]  %s3, 2560, %s34, [#allocation5], 128, 128, 8
    $region17: #{qnn_forward.1} parent=1 // pred_fallthru
      _
    // Predicated region
    $region18: #{qnn_forward.1} parent=1 // pred_check
      _
    $region19: #{qnn_forward.1} parent=1 // pred_check_branch
      %41 = sbr.rel (0) target = $region21
    $region20: #{qnn_forward.1} parent=1 // pred_region
      _
    $region21: #{qnn_forward.1} parent=1 // pred_fallthru
      _
    // Predicated region
    $region22: #{qnn_forward.1} parent=1 // pred_check
      _
    $region23: #{qnn_forward.1} parent=1 // pred_check_branch
      %43 = sbr.rel (0) target = $region25
    $region24: #{qnn_forward.1} parent=1 // pred_region
      %44 = dma.done [#allocation3], 1024
    $region25: #{qnn_forward.1} parent=1 // pred_fallthru
      _
    // Predicated region
    $region26: #{qnn_forward.1} parent=1 // pred_check
      _
    $region27: #{qnn_forward.1} parent=1 // pred_check_branch
      %46 = sbr.rel (0) target = $region29
    $region28: #{qnn_forward.1} parent=1 // pred_region
      %47 = dma.done [#allocation5], 2560
    $region29: #{qnn_forward.1} parent=1 // pred_fallthru
      _
    %v48 = vld [vmem:[%s0] sm:$0xff]
    %v49 = vld [vmem:[%s0 + $0x8] sm:$0xff]
    %v50 = vld [vmem:[#allocation2] sm:$0xff]
    %v51 = vld [vmem:[#allocation2 + $0x8] sm:$0xff]
    %v52 = vld [vmem:[#allocation2 + $0x10] sm:$0xff]
    %v53 = vld [vmem:[#allocation2 + $0x18] sm:$0xff]
    %v54 = vld [vmem:[#allocation2 + $0x20] sm:$0xff]
    %v55 = vld [vmem:[#allocation2 + $0x28] sm:$0xff]
    %v56 = vld [vmem:[#allocation2 + $0x30] sm:$0xff]
    %v57 = vld [vmem:[#allocation2 + $0x38] sm:$0xff]
    %v58 = vld [vmem:[%s2] sm:$0x3]
    %v60 = vlaneseq
    %v61 = vshrl.u32 %v60, 7
    %v62 = vsub.s32 0, %v61
    %v63 = vrot.slane %v58, %v62
    %v64 = vlaneseq
    %v65 = vshrl.u32 %v64, 7
    %v66 = vsub.s32 1, %v65
    %v67 = vrot.slane %v58, %v66
    %vm70 = vcmask 261120
    %v72 = vsel %vm70, %v48, 0
    %v75 = vsel %vm70, %v49, 0
    %77 = vmatprep.subr.mxu0 %v51
    %78 = vmatpush1.msra.mxu0 %v50
    %79 = vmatprep.subr.mxu0 %v53
    %80 = vmatpush1.msra.mxu0 %v52
    %81 = vmatprep.subr.mxu0 %v55
    %82 = vmatpush1.msra.mxu0 %v54
    %83 = vmatprep.subr.mxu0 %v57
    %84 = vmatpush1.msra.mxu0 %v56
    %85 = vmatprep.subr.mxu0 0.0
    %86 = vmatpush1.msra.mxu0 0.0
    %87 = vmatprep.subr.mxu0 0.0
    %88 = vmatpush1.msra.mxu0 0.0
    %89 = vmatprep.subr.mxu0 0.0
    %90 = vmatpush1.msra.mxu0 0.0
    %91 = vmatprep.subr.mxu0 0.0
    %92 = vmatpush1.msra.mxu0 0.0
    %93 = vmatprep.subr.mxu0 0.0
    %94 = vmatpush1.msra.mxu0 0.0
    %95 = vmatprep.subr.mxu0 0.0
    %96 = vmatpush1.msra.mxu0 0.0
    %97 = vmatprep.subr.mxu0 0.0
    %98 = vmatpush1.msra.mxu0 0.0
    %99 = vmatprep.subr.mxu0 0.0
    %100 = vmatpush1.msra.mxu0 0.0
    %101 = vmatprep.subr.mxu0 0.0
    %102 = vmatpush1.msra.mxu0 0.0
    %103 = vmatprep.subr.mxu0 0.0
    %104 = vmatpush1.msra.mxu0 0.0
    %105 = vmatprep.subr.mxu0 0.0
    %106 = vmatpush1.msra.mxu0 0.0
    %107 = vmatprep.subr.mxu0 0.0
    %108 = vmatpush1.msra.mxu0 0.0
    %109 = vmatprep.subr.mxu0 0.0
    %110 = vmatpush1.msra.mxu0 0.0
    %111 = vmatprep.subr.mxu0 0.0
    %112 = vmatpush1.msra.mxu0 0.0
    %113 = vmatprep.subr.mxu0 0.0
    %114 = vmatpush1.msra.mxu0 0.0
    %115 = vmatprep.subr.mxu0 0.0
    %116 = vmatpush1.msra.mxu0 0.0
    %117 = vmatprep.subr.mxu0 0.0
    %118 = vmatpush1.msra.mxu0 0.0
    %119 = vmatprep.subr.mxu0 0.0
    %120 = vmatpush1.msra.mxu0 0.0
    %121 = vmatprep.subr.mxu0 0.0
    %122 = vmatpush1.msra.mxu0 0.0
    %123 = vmatprep.subr.mxu0 0.0
    %124 = vmatpush1.msra.mxu0 0.0
    %125 = vmatprep.subr.mxu0 0.0
    %126 = vmatpush1.msra.mxu0 0.0
    %127 = vmatprep.subr.mxu0 0.0
    %128 = vmatpush1.msra.mxu0 0.0
    %129 = vmatprep.subr.mxu0 0.0
    %130 = vmatpush1.msra.mxu0 0.0
    %131 = vmatprep.subr.mxu0 0.0
    %132 = vmatpush1.msra.mxu0 0.0
    %133 = vmatprep.subr.mxu0 0.0
    %134 = vmatpush1.msra.mxu0 0.0
    %135 = vmatprep.subr.mxu0 0.0
    %136 = vmatpush1.msra.mxu0 0.0
    %137 = vmatprep.subr.mxu0 0.0
    %138 = vmatpush1.msra.mxu0 0.0
    %139 = vmatprep.subr.mxu0 0.0
    %140 = vmatpush1.msra.mxu0 0.0
    %141 = vmatprep.mubr.f32.mxu0 0.0
    %142 = vmatmul.mubr.f32.gmra.mrb[0].mxu0 %v72
    %v143 = vpop.f32.mrb[0].mxu0
    %v144 = vadd.f32 %v63, %v143
    %v145 = vpop.f32.mrb[0].mxu0
    %v146 = vadd.f32 %v67, %v145
    %147 = vmatprep.mubr.f32.mxu0 0.0
    %148 = vmatmul.mubr.f32.gmra.mrb[0].mxu0 %v75
    %v149 = vpop.f32.mrb[0].mxu0
    %v150 = vadd.f32 %v63, %v149
    %v151 = vpop.f32.mrb[0].mxu0
    %v152 = vadd.f32 %v67, %v151
    %153 = vdwg.mxu0
    %v154 = vtanh.pop %v144
    %v155 = vtanh.pop %v146
    %v156 = vtanh.pop %v150
    %v157 = vtanh.pop %v152
    %v158 = vld [vmem:[#allocation4] sm:$0xff]
    %v159 = vld [vmem:[#allocation4 + $0x8] sm:$0xff]
    %v160 = vld [vmem:[#allocation4 + $0x10] sm:$0xff]
    %v161 = vld [vmem:[#allocation4 + $0x18] sm:$0xff]
    %v162 = vld [vmem:[#allocation4 + $0x20] sm:$0xff]
    %v163 = vld [vmem:[#allocation4 + $0x28] sm:$0xff]
    %v164 = vld [vmem:[#allocation4 + $0x30] sm:$0xff]
    %v165 = vld [vmem:[#allocation4 + $0x38] sm:$0xff]
    %v166 = vld [vmem:[#allocation4 + $0x40] sm:$0xff]
    %v167 = vld [vmem:[#allocation4 + $0x48] sm:$0xff]
    %v168 = vld [vmem:[#allocation4 + $0x50] sm:$0xff]
    %v169 = vld [vmem:[#allocation4 + $0x58] sm:$0xff]
    %v170 = vld [vmem:[#allocation4 + $0x60] sm:$0xff]
    %v171 = vld [vmem:[#allocation4 + $0x68] sm:$0xff]
    %v172 = vld [vmem:[#allocation4 + $0x70] sm:$0xff]
    %v173 = vld [vmem:[#allocation4 + $0x78] sm:$0xff]
    %v174 = vld [vmem:[#allocation4 + $0x80] sm:$0xff]
    %v175 = vld [vmem:[#allocation4 + $0x88] sm:$0xff]
    %v176 = vld [vmem:[#allocation4 + $0x90] sm:$0xff]
    %v177 = vld [vmem:[#allocation4 + $0x98] sm:$0xff]
    %v178 = vld [vmem:[%s4] sm:$0x1]
    %v180 = vlaneseq
    %v181 = vshrl.u32 %v180, 7
    %v182 = vsub.s32 0, %v181
    %v183 = vrot.slane %v178, %v182
    %v186 = vsel %vm70, %v155, 0
    %v189 = vsel %vm70, %v157, 0
    %191 = vmatprep.subr.mxu0 0.0
    %192 = vmatpush1.msra.mxu0 %v158
    %193 = vmatprep.subr.mxu0 0.0
    %194 = vmatpush1.msra.mxu0 %v159
    %195 = vmatprep.subr.mxu0 0.0
    %196 = vmatpush1.msra.mxu0 %v160
    %197 = vmatprep.subr.mxu0 0.0
    %198 = vmatpush1.msra.mxu0 %v161
    %199 = vmatprep.subr.mxu0 0.0
    %200 = vmatpush1.msra.mxu0 %v162
    %201 = vmatprep.subr.mxu0 0.0
    %202 = vmatpush1.msra.mxu0 %v163
    %203 = vmatprep.subr.mxu0 0.0
    %204 = vmatpush1.msra.mxu0 %v164
    %205 = vmatprep.subr.mxu0 0.0
    %206 = vmatpush1.msra.mxu0 %v165
    %207 = vmatprep.subr.mxu0 0.0
    %208 = vmatpush1.msra.mxu0 %v166
    %209 = vmatprep.subr.mxu0 0.0
    %210 = vmatpush1.msra.mxu0 %v167
    %211 = vmatprep.subr.mxu0 0.0
    %212 = vmatpush1.msra.mxu0 %v168
    %213 = vmatprep.subr.mxu0 0.0
    %214 = vmatpush1.msra.mxu0 %v169
    %215 = vmatprep.subr.mxu0 0.0
    %216 = vmatpush1.msra.mxu0 %v170
    %217 = vmatprep.subr.mxu0 0.0
    %218 = vmatpush1.msra.mxu0 %v171
    %219 = vmatprep.subr.mxu0 0.0
    %220 = vmatpush1.msra.mxu0 %v172
    %221 = vmatprep.subr.mxu0 0.0
    %222 = vmatpush1.msra.mxu0 %v173
    %223 = vmatprep.subr.mxu0 0.0
    %224 = vmatpush1.msra.mxu0 %v174
    %225 = vmatprep.subr.mxu0 0.0
    %226 = vmatpush1.msra.mxu0 %v175
    %227 = vmatprep.subr.mxu0 0.0
    %228 = vmatpush1.msra.mxu0 %v176
    %229 = vmatprep.subr.mxu0 0.0
    %230 = vmatpush1.msra.mxu0 %v177
    %231 = vmatprep.subr.mxu0 0.0
    %232 = vmatpush1.msra.mxu0 0.0
    %233 = vmatprep.subr.mxu0 0.0
    %234 = vmatpush1.msra.mxu0 0.0
    %235 = vmatprep.subr.mxu0 0.0
    %236 = vmatpush1.msra.mxu0 0.0
    %237 = vmatprep.subr.mxu0 0.0
    %238 = vmatpush1.msra.mxu0 0.0
    %239 = vmatprep.subr.mxu0 0.0
    %240 = vmatpush1.msra.mxu0 0.0
    %241 = vmatprep.subr.mxu0 0.0
    %242 = vmatpush1.msra.mxu0 0.0
    %243 = vmatprep.subr.mxu0 0.0
    %244 = vmatpush1.msra.mxu0 0.0
    %245 = vmatprep.subr.mxu0 0.0
    %246 = vmatpush1.msra.mxu0 0.0
    %247 = vmatprep.subr.mxu0 0.0
    %248 = vmatpush1.msra.mxu0 0.0
    %249 = vmatprep.subr.mxu0 0.0
    %250 = vmatpush1.msra.mxu0 0.0
    %251 = vmatprep.subr.mxu0 0.0
    %252 = vmatpush1.msra.mxu0 0.0
    %253 = vmatprep.subr.mxu0 0.0
    %254 = vmatpush1.msra.mxu0 0.0
    %255 = vmatprep.mubr.f32.mxu0 %v186
    %256 = vmatmul.mubr.f32.gmra.mrb[0].mxu0 %v154
    %v257 = vpop.f32.mrb[0].mxu0
    %v258 = vadd.f32 %v183, %v257
    %v259 = vpop.f32.mrb[0].mxu0
    %260 = vmatprep.mubr.f32.mxu0 %v189
    %261 = vmatmul.mubr.f32.gmra.mrb[0].mxu0 %v156
    %v262 = vpop.f32.mrb[0].mxu0
    %v263 = vadd.f32 %v183, %v262
    %v264 = vpop.f32.mrb[0].mxu0
    %265 = vdwg.mxu0
    %266 = vst [vmem:[#allocation6] sm:$0xff] %v258
    %267 = vst [vmem:[#allocation6 + $0x8] sm:$0xff] %v263
    // Predicated region
    $region30: #{qnn_forward.1} parent=1 // pred_check
      _
    $region31: #{qnn_forward.1} parent=1 // pred_check_branch
      %269 = sbr.rel (0) target = $region33
    $region32: #{qnn_forward.1} parent=1 // pred_region
      // Predicated region
      $region34: #{qnn_forward.1} parent=32 // pred_check
        _
      $region35: #{qnn_forward.1} parent=32 // pred_check_branch
        %271 = sbr.rel (0) target = $region37
      $region36: #{qnn_forward.1} parent=32 // pred_region
        // Predicated region
        $region38: #{qnn_forward.1} parent=36 // pred_check
          _
        $region39: #{qnn_forward.1} parent=36 // pred_check_branch
          %273 = sbr.rel target = $region41
        $region40: #{qnn_forward.1} parent=36 // pred_region
          // Predicated region
          $region53: #{qnn_forward.1} parent=40 // pred_check
            _
          $region54: #{qnn_forward.1} parent=40 // pred_check_branch
            %288 = sbr.rel (0) target = $region56
          $region55: #{qnn_forward.1} parent=40 // pred_region
            loop: start=0, step=1, limit=1
            $region57: #{qnn_forward.1} parent=55 // loop_pre_header
              _
            $region58: #{qnn_forward.1} parent=55 // loop_header
              %s291 = sphi 0, %s295
              %p292 = scmp.ge.s32.totalorder %s291, 1
              %s296 = sphi [#allocation6], [#allocation6]
              %s297 = sphi %s5, %s5
            $region59: #{qnn_forward.1} parent=55 // loop_header_branch
              %294 = sbr.rel (%p292) target = $region63
            $region60: #{qnn_forward.1} parent=55 // loop_body
              %v298 = vld [vmem:[%s296] sm:$0x1]
              %299 = vst [vmem:[%s297] sm:$0x1] %v298
            $region61: #{qnn_forward.1} parent=55 // loop_footer
              %s295 = sadd.s32 1, %s291
            $region62: #{qnn_forward.1} parent=55 // loop_footer_branch
              %290 = sbr.rel target = $region58
            $region63: #{qnn_forward.1} parent=55 // loop_exit
              _
          $region56: #{qnn_forward.1} parent=40 // pred_fallthru
            _
        $region41: #{qnn_forward.1} parent=36 // pred_fallthru
          _
        // Predicated region
        $region42: #{qnn_forward.1} parent=36 // pred_check
          _
        $region43: #{qnn_forward.1} parent=36 // pred_check_branch
          %275 = sbr.rel (0) target = $region45
        $region44: #{qnn_forward.1} parent=36 // pred_region
          loop: start=0, step=1, limit=1
          $region46: #{qnn_forward.1} parent=44 // loop_pre_header
            _
          $region47: #{qnn_forward.1} parent=44 // loop_header
            %s278 = sphi 0, %s282
            %p279 = scmp.ge.s32.totalorder %s278, 1
            %s283 = sphi [#allocation6], [#allocation6]
            %s284 = sphi %s5, %s5
          $region48: #{qnn_forward.1} parent=44 // loop_header_branch
            %281 = sbr.rel (%p279) target = $region52
          $region49: #{qnn_forward.1} parent=44 // loop_body
            %v285 = vld [vmem:[%s283] sm:$0x1]
            %286 = vst [vmem:[%s284] sm:$0x1] %v285
          $region50: #{qnn_forward.1} parent=44 // loop_footer
            %s282 = sadd.s32 1, %s278
          $region51: #{qnn_forward.1} parent=44 // loop_footer_branch
            %277 = sbr.rel target = $region47
          $region52: #{qnn_forward.1} parent=44 // loop_exit
            _
        $region45: #{qnn_forward.1} parent=36 // pred_fallthru
          _
      $region37: #{qnn_forward.1} parent=32 // pred_fallthru
        _
      %300 = vnop
    $region33: #{qnn_forward.1} parent=1 // pred_fallthru
      _
    // Predicated region
    $region64: #{qnn_forward.1} parent=1 // pred_check
      _
    $region65: #{qnn_forward.1} parent=1 // pred_check_branch
      %302 = sbr.rel (0) target = $region67
    $region66: #{qnn_forward.1} parent=1 // pred_region
      _
    $region67: #{qnn_forward.1} parent=1 // pred_fallthru
      _
    %303 = vsyncpa [#allocation3], 1
    %304 = vsyncpa [#allocation5], 1

</llo_original>
